<compile_context>
chip_gen: v7x
topology: tpu7x:2x2x1
jax: 0.10.0
libtpu: 0.0.40
codegen_flags: <defaults>
</compile_context>

<pallas_src>
import functools

import jax
import jax.numpy as jnp
from jax.experimental import pallas as pl
from jax.experimental.pallas import tpu as pltpu


def _round_up(x, m):
    return (x + m - 1) // m * m


def _conv_same_kernel(x_ref, w_ref, b_ref, o_ref, *, tap_offsets, tile, win_size):
    # x_ref: (1, Cin, L)   whole reflection-padded image, spatial flattened;
    #                      constant block index over the tile axis -> fetched
    #                      once per batch and reused for every spatial tile.
    # w_ref: (Cout, KKC)   flattened weights (constant block across the grid)
    # b_ref: (Cout, 1)     bias
    # o_ref: (1, Cout, T)  lane-dense output tile (flattened, Wp-column pitch)
    q = pl.program_id(1)
    t0 = pl.multiple_of(q * tile, 128)            # tile is a multiple of 128
    window = x_ref[0, :, pl.ds(t0, win_size)]     # (Cin, win_size), aligned load

    # In-VMEM im2col: K*K static shifted slices of the window, stacked along
    # sublanes in (kh, kw, cin) order to match the weight flattening below.
    patches = jnp.concatenate([window[:, d:d + tile] for d in tap_offsets], axis=0)

    acc = jnp.dot(w_ref[...], patches, preferred_element_type=jnp.float32)
    acc = acc + b_ref[...].astype(jnp.float32)
    o_ref[0] = acc.astype(o_ref.dtype)


def _pick_tile(lout_raw, kkc, cout, itemsize, n_batch,
               target_bytes=2 << 20, max_tile=4096):
    """Lane tile T: multiple of 128, per-step patch+out working set ~target.

    max_tile/target could be raised further on v5e/v6e (128 MiB VMEM); kept
    moderate so the same tiling also fits v7x's 64 MiB.
    """
    t = (target_bytes // max(1, (kkc + 2 * cout) * itemsize)) // 128 * 128
    t = max(128, min(t, max_tile))
    t = min(t, _round_up(lout_raw, 128))          # no point exceeding the extent
    if n_batch == 1:
        # Guarantee >= 2 grid steps so both v7x TensorCores get work.
        t = min(t, max(128, _round_up(pl.cdiv(lout_raw, 2), 128)))
    return t


def conv2d_same(x_nchw, weight_oihw, bias, kernel_size):
    """Matches torch Conv2dSame: ReflectionPad2d((ka, kb, ka, kb)) -> Conv2d(K)."""
    K = kernel_size
    ka = K // 2
    kb = ka - 1 if K % 2 == 0 else ka             # ka + kb == K - 1

    N, Cin, H, W = x_nchw.shape
    Cout = weight_oihw.shape[0]
    Hp, Wp = H + ka + kb, W + ka + kb
    KKC = K * K * Cin
    itemsize = jnp.dtype(x_nchw.dtype).itemsize

    # --- glue: reflection pad only (~1x activation traffic), stays NCHW -------
    # torch pad order (left, right, top, bottom) == (ka, kb, ka, kb).
    x_pad = jnp.pad(x_nchw, ((0, 0), (0, 0), (ka, kb), (ka, kb)), mode="reflect")
    x_flat = x_pad.reshape(N, Cin, Hp * Wp)       # contiguous, free

    # Flattened-padded-spatial conv: for output row h (< H) and padded column
    # w (< Wp), out[:, h*Wp + w] = sum_d W[:, d] * x_flat[:, h*Wp + w + d] with
    # the K*K static offsets d = kh*Wp + kw.  Columns w >= W are garbage and
    # are cropped after the kernel.
    lout_raw = H * Wp
    tap_offsets = tuple(kh * Wp + kw for kh in range(K) for kw in range(K))
    d_max = tap_offsets[-1]

    T = _pick_tile(lout_raw, KKC, Cout, itemsize, N)
    n_tiles = pl.cdiv(lout_raw, T)
    Lout = n_tiles * T
    win_size = _round_up(T + d_max, 128)          # aligned per-tile window load
    L = (n_tiles - 1) * T + win_size              # flat input length incl. halo
    x_in = jnp.pad(x_flat, ((0, 0), (0, 0), (0, L - Hp * Wp)))  # tail never used
                                                                # by valid outputs

    # OIHW -> (Cout, K*K*Cin) flattened in (kh, kw, cin) order (matches kernel).
    w_mat = jnp.transpose(weight_oihw, (0, 2, 3, 1)).reshape(Cout, KKC)
    b_col = bias.reshape(Cout, 1)

    # --- specs -----------------------------------------------------------------
    in_specs = [pl.BlockSpec((1, Cin, L), lambda n, q: (n, 0, 0))]
    w_map = lambda n, q: (0, 0)
    b_map = lambda n, q: (0, 0)
    if Cout * KKC * itemsize >= (1 << 20):
        # Large constant operands: single-buffer (never re-fetched) to free VMEM.
        in_specs.append(pl.BlockSpec((Cout, KKC), w_map, pipeline_mode=pl.Buffered(1)))
        in_specs.append(pl.BlockSpec((Cout, 1), b_map, pipeline_mode=pl.Buffered(1)))
    else:
        in_specs.append(pl.BlockSpec((Cout, KKC), w_map))
        in_specs.append(pl.BlockSpec((Cout, 1), b_map))

    vmem_need = itemsize * (2 * Cin * L            # image slab, double-buffered
                            + 2 * Cout * T         # output tile, double-buffered
                            + 2 * Cout * KKC + Cout
                            + Cin * win_size + KKC * T)  # in-kernel intermediates
    vmem_need += 4 * Cout * T                      # f32 accumulator
    vmem_limit = int(min(max(vmem_need * 5 // 4, 32 << 20), 64 << 20))

    cost = pl.CostEstimate(
        flops=2 * N * Lout * KKC * Cout,
        transcendentals=0,
        bytes_accessed=itemsize * (N * Cin * L + Cout * KKC + Cout + N * Cout * Lout),
    )

    out_flat = pl.pallas_call(
        functools.partial(_conv_same_kernel, tap_offsets=tap_offsets,
                          tile=T, win_size=win_size),
        out_shape=jax.ShapeDtypeStruct((N, Cout, Lout), x_nchw.dtype),
        grid=(N, n_tiles),
        in_specs=in_specs,
        out_specs=pl.BlockSpec((1, Cout, T), lambda n, q: (n, 0, q)),
        compiler_params=pltpu.CompilerParams(
            dimension_semantics=("parallel", "parallel"),
            vmem_limit_bytes=vmem_limit),
        cost_estimate=cost,
    )(x_in, w_mat, b_col)

    # Crop garbage columns (w in [W, Wp)) and the rounded-up tail.  All reshapes
    # here are contiguous; no transposes.
    return out_flat[:, :, :lout_raw].reshape(N, Cout, H, Wp)[:, :, :, :W]


if __name__ == "__main__":
    key = jax.random.PRNGKey(0)
    k_x, k_w, k_b = jax.random.split(key, 3)

    # Small shapes consistent with the module.
    N, Cin, H, W = 2, 4, 16, 16
    Cout, K = 8, 3

    x = jax.random.normal(k_x, (N, Cin, H, W), dtype=jnp.float32)
    weight = jax.random.normal(k_w, (Cout, Cin, K, K), dtype=jnp.float32) * 0.1
    bias = jax.random.normal(k_b, (Cout,), dtype=jnp.float32) * 0.1

    conv = jax.jit(functools.partial(conv2d_same, kernel_size=K))
    out = jax.block_until_ready(conv(x, weight, bias))

    # Reference check against XLA conv on the same reflection-padded input.
    ka = K // 2
    kb = ka - 1 if K % 2 == 0 else ka
    x_pad = jnp.pad(x, ((0, 0), (0, 0), (ka, kb), (ka, kb)), mode="reflect")
    ref = jax.lax.conv_general_dilated(
        x_pad, weight, window_strides=(1, 1), padding="VALID",
        dimension_numbers=("NCHW", "OIHW", "NCHW"),
    ) + bias.reshape(1, Cout, 1, 1)

    assert out.shape == (N, Cout, H, W)
    assert jnp.allclose(out, ref, atol=1e-4, rtol=1e-4)
    print("KERNEL_OK")
</pallas_src>

<mosaic_0001>
module attributes {stable_mosaic.version = 11 : i64} {
  func.func @_conv_same_kernel(%arg0: i32, %arg1: i32, %arg2: memref<1x4x512xf32, #tpu.memory_space<vmem>>, %arg3: memref<8x36xf32, #tpu.memory_space<vmem>>, %arg4: memref<8x1xf32, #tpu.memory_space<vmem>>, %arg5: memref<1x8x384xf32, #tpu.memory_space<vmem>>) attributes {dimension_semantics = [#tpu.dimension_semantics<parallel>, #tpu.dimension_semantics<parallel>], iteration_bounds = array<i64: 2, 1>, scalar_prefetch = 0 : i64, scratch_operands = 0 : i64, tpu.core_type = #tpu.core_type<tc>, window_params = [{transform_indices = @transform_0, window_bounds = array<i64: 1, 4, 512>}, {pipeline_mode = #tpu.pipeline_mode<synchronous>, transform_indices = @transform_1, window_bounds = array<i64: 8, 36>}, {pipeline_mode = #tpu.pipeline_mode<synchronous>, transform_indices = @transform_2, window_bounds = array<i64: 8, 1>}, {transform_indices = @transform_3, window_bounds = array<i64: 1, 8, 384>}]} {
    %c384_i32 = arith.constant 384 : i32
    %0 = arith.muli %arg1, %c384_i32 : i32
    %1 = tpu.assume_multiple %0, 128 : i32
    %c0 = arith.constant 0 : index
    %c0_0 = arith.constant 0 : index
    %2 = arith.index_cast %1 : i32 to index
    %3 = vector.load %arg2[%c0, %c0_0, %2] : memref<1x4x512xf32, #tpu.memory_space<vmem>>, vector<1x4x512xf32>
    %4 = vector.shape_cast %3 : vector<1x4x512xf32> to vector<4x512xf32>
    %5 = vector.extract_strided_slice %4 {offsets = [0, 0], sizes = [4, 384], strides = [1, 1]} : vector<4x512xf32> to vector<4x384xf32>
    %6 = vector.extract_strided_slice %4 {offsets = [0, 1], sizes = [4, 384], strides = [1, 1]} : vector<4x512xf32> to vector<4x384xf32>
    %7 = vector.extract_strided_slice %4 {offsets = [0, 2], sizes = [4, 384], strides = [1, 1]} : vector<4x512xf32> to vector<4x384xf32>
    %8 = vector.extract_strided_slice %4 {offsets = [0, 18], sizes = [4, 384], strides = [1, 1]} : vector<4x512xf32> to vector<4x384xf32>
    %9 = vector.extract_strided_slice %4 {offsets = [0, 19], sizes = [4, 384], strides = [1, 1]} : vector<4x512xf32> to vector<4x384xf32>
    %10 = vector.extract_strided_slice %4 {offsets = [0, 20], sizes = [4, 384], strides = [1, 1]} : vector<4x512xf32> to vector<4x384xf32>
    %11 = vector.extract_strided_slice %4 {offsets = [0, 36], sizes = [4, 384], strides = [1, 1]} : vector<4x512xf32> to vector<4x384xf32>
    %12 = vector.extract_strided_slice %4 {offsets = [0, 37], sizes = [4, 384], strides = [1, 1]} : vector<4x512xf32> to vector<4x384xf32>
    %13 = vector.extract_strided_slice %4 {offsets = [0, 38], sizes = [4, 384], strides = [1, 1]} : vector<4x512xf32> to vector<4x384xf32>
    %14 = tpu.concatenate %5, %6, %7, %8, %9, %10, %11, %12, %13 in 0 : vector<4x384xf32>, vector<4x384xf32>, vector<4x384xf32>, vector<4x384xf32>, vector<4x384xf32>, vector<4x384xf32>, vector<4x384xf32>, vector<4x384xf32>, vector<4x384xf32> -> vector<36x384xf32>
    %c0_1 = arith.constant 0 : index
    %c0_2 = arith.constant 0 : index
    %15 = vector.load %arg3[%c0_1, %c0_2] : memref<8x36xf32, #tpu.memory_space<vmem>>, vector<8x36xf32>
    %cst = arith.constant dense<0.000000e+00> : vector<8x384xf32>
    %16 = tpu.matmul %15, %14, %cst {dimension_numbers = #tpu.dot_dimension_numbers<[1], [0], [0], [1], [0, 0, 1, 1], [], []>} : vector<8x36xf32>, vector<36x384xf32>, vector<8x384xf32> -> vector<8x384xf32>
    %c0_3 = arith.constant 0 : index
    %c0_4 = arith.constant 0 : index
    %17 = vector.load %arg4[%c0_3, %c0_4] : memref<8x1xf32, #tpu.memory_space<vmem>>, vector<8x1xf32>
    %18 = vector.broadcast %17 : vector<8x1xf32> to vector<8x384xf32>
    %19 = arith.addf %16, %18 : vector<8x384xf32>
    %c0_5 = arith.constant 0 : index
    %c0_6 = arith.constant 0 : index
    %c0_7 = arith.constant 0 : index
    %20 = vector.load %arg5[%c0_5, %c0_6, %c0_7] : memref<1x8x384xf32, #tpu.memory_space<vmem>>, vector<1x8x384xf32>
    %21 = vector.shape_cast %20 : vector<1x8x384xf32> to vector<8x384xf32>
    %22 = vector.shape_cast %19 : vector<8x384xf32> to vector<1x8x384xf32>
    tpu.vector_store %arg5[%c0_5, %c0_6, %c0_7], %22 {strides = array<i32>} : memref<1x8x384xf32, #tpu.memory_space<vmem>>, vector<1x8x384xf32>,
    return
  }
  func.func @transform_0(%arg0: i32, %arg1: i32) -> (i32, i32, i32) {
    %c0_i32 = arith.constant 0 : i32
    %c0_i32_0 = arith.constant 0 : i32
    %c0_i32_1 = arith.constant 0 : i32
    return %arg0, %c0_i32, %c0_i32_0 : i32, i32, i32
  }
  func.func @transform_1(%arg0: i32, %arg1: i32) -> (i32, i32) {
    %c0_i32 = arith.constant 0 : i32
    %c0_i32_0 = arith.constant 0 : i32
    %c0_i32_1 = arith.constant 0 : i32
    return %c0_i32, %c0_i32_0 : i32, i32
  }
  func.func @transform_2(%arg0: i32, %arg1: i32) -> (i32, i32) {
    %c0_i32 = arith.constant 0 : i32
    %c0_i32_0 = arith.constant 0 : i32
    %c0_i32_1 = arith.constant 0 : i32
    return %c0_i32, %c0_i32_0 : i32, i32
  }
  func.func @transform_3(%arg0: i32, %arg1: i32) -> (i32, i32, i32) {
    %c0_i32 = arith.constant 0 : i32
    %c0_i32_0 = arith.constant 0 : i32
    return %arg0, %c0_i32, %arg1 : i32, i32, i32
  }
}

</mosaic_0001>

<llo_original>
// kernel: conv2d_same.1
$region0: #{conv2d_same.1}
  #allocation0 [shape = 'u32[]', space=smem, size = 0x4, offset = 0x4, fixed_abs, tag = 'smem constant byte address 0x4 - core index']
  #allocation1 [shape = 'u32[144,128]{1,0:T(1,128)}', space=vmem, size = 0x12000, scoped, tag = 'internal scratch']
  %s0 = inlined_call_operand.vmem [shape: f32[2,4,512], index: 0, kind: input, shape index: {}]
  %s1 = inlined_call_operand.vmem [shape: f32[8,36], index: 1, kind: input, shape index: {}]
  %s2 = inlined_call_operand.vmem [shape: f32[8,1], index: 2, kind: input, shape index: {}]
  %s3 = inlined_call_operand.vmem [shape: f32[2,8,384], index: 3, kind: output, shape index: {}]
  %s4 = sld [smem:[#allocation0]]
  $region45: #{conv2d_same.1} parent=0
    _
  %s6 = ssub.s32 1, %s4
  %s7 = scalar_select 0, %s6, %s4
  loop: start=0, step=1, limit=4
  $region2: #{conv2d_same.1} parent=0 // loop_pre_header
    _
  $region3: #{conv2d_same.1} parent=0 // loop_header
    %s9 = sphi 0, %s13
    %p10 = scmp.ge.s32.totalorder %s9, 4
    %s16 = sphi 0, %s28
    %s17 = sphi 0, %s24
    %s18 = sphi 0, %s16
    %s19 = sphi 0, %s17
    %s20 = sphi 0, %s18
    %s21 = sphi 0, %s19
    %s31 = sphi 0, %s33
    %s34 = sphi 0, %s31
    %s35 = sphi 0, %s34
    %s51 = sphi 0, %s35
    %s55 = sphi 0, %s55
    %s57 = sphi 0, %s55
    %s58 = sphi 0, %s57
    %s72 = sphi 0, %s58
    %s76 = sphi 0, %s76
    %s78 = sphi 0, %s76
    %s79 = sphi 0, %s78
    %s93 = sphi 0, %s79
    %s101 = sphi 0, %s103
    %s104 = sphi 0, %s101
    %s105 = sphi 0, %s104
    %s121 = sphi 0, %s105
  $region4: #{conv2d_same.1} parent=0 // loop_header_branch
    %12 = sbr.rel (%p10) target = $region8
  $region5: #{conv2d_same.1} parent=0 // loop_body
    %s14 = ssub.s32 %s9, 1
    %s15 = ssub.s32 %s9, 2
    %s22 = sadd.s32 1, %s17
    %p23 = scmp.ge.s32.totalorder %s22, 1
    %s24 = scalar_select %p23, 0, %s22
    %s25 = sadd.s32 1, %s16
    %s26 = scalar_select %p23, %s25, %s16
    %p27 = scmp.ge.s32.totalorder %s26, 2
    %s28 = scalar_select %p27, 0, %s26
    %s29 = ssub.s32 %s16, %s28
    %p30 = scmp.eq.s32.totalorder %s29, 0
    %s32 = sadd.s32 %s31, 1
    %s33 = scalar_select %p30, %s31, %s32
    %p36 = pneg %p30
    %p37 = scmp.eq.s32.totalorder %s9, 1
    %p38 = por %p36, %p37
    %p39 = scmp.ne.s32.totalorder %s31, %s34
    %p40 = scmp.eq.s32.totalorder %s9, 0
    %p41 = por %p39, %p40
    %p42 = scmp.ne.s32.totalorder %s31, %s34
    %p43 = scmp.eq.s32.totalorder %s14, 1
    %p44 = por %p42, %p43
    %p45 = scmp.ne.s32.totalorder %s34, %s35
    %p46 = scmp.eq.s32.totalorder %s14, 0
    %p47 = por %p45, %p46
    %p48 = scmp.ne.s32.totalorder %s34, %s35
    %p49 = scmp.eq.s32.totalorder %s15, 1
    %p50 = por %p48, %p49
    %p52 = scmp.ne.s32.totalorder %s35, %s51
    %p53 = scmp.eq.s32.totalorder %s15, 0
    %p54 = por %p52, %p53
    %s56 = sadd.s32 %s55, 1
    %p59 = scmp.eq.s32.totalorder %s9, 1
    %p60 = scmp.ne.s32.totalorder %s55, %s57
    %p61 = scmp.eq.s32.totalorder %s9, 0
    %p62 = por %p60, %p61
    %p63 = scmp.ne.s32.totalorder %s55, %s57
    %p64 = scmp.eq.s32.totalorder %s14, 1
    %p65 = por %p63, %p64
    %p66 = scmp.ne.s32.totalorder %s57, %s58
    %p67 = scmp.eq.s32.totalorder %s14, 0
    %p68 = por %p66, %p67
    %p69 = scmp.ne.s32.totalorder %s57, %s58
    %p70 = scmp.eq.s32.totalorder %s15, 1
    %p71 = por %p69, %p70
    %p73 = scmp.ne.s32.totalorder %s58, %s72
    %p74 = scmp.eq.s32.totalorder %s15, 0
    %p75 = por %p73, %p74
    %s77 = sadd.s32 %s76, 1
    %p80 = scmp.eq.s32.totalorder %s9, 1
    %p81 = scmp.ne.s32.totalorder %s76, %s78
    %p82 = scmp.eq.s32.totalorder %s9, 0
    %p83 = por %p81, %p82
    %p84 = scmp.ne.s32.totalorder %s76, %s78
    %p85 = scmp.eq.s32.totalorder %s14, 1
    %p86 = por %p84, %p85
    %p87 = scmp.ne.s32.totalorder %s78, %s79
    %p88 = scmp.eq.s32.totalorder %s14, 0
    %p89 = por %p87, %p88
    %p90 = scmp.ne.s32.totalorder %s78, %s79
    %p91 = scmp.eq.s32.totalorder %s15, 1
    %p92 = por %p90, %p91
    %p94 = scmp.ne.s32.totalorder %s79, %s93
    %p95 = scmp.eq.s32.totalorder %s15, 0
    %p96 = por %p94, %p95
    %s97 = ssub.s32 %s16, %s28
    %s98 = ssub.s32 %s17, %s24
    %s99 = sor.u32 %s97, %s98
    %p100 = scmp.eq.s32.totalorder %s99, 0
    %s102 = sadd.s32 %s101, 1
    %s103 = scalar_select %p100, %s101, %s102
    %p106 = pneg %p100
    %p107 = scmp.eq.s32.totalorder %s9, 1
    %p108 = por %p106, %p107
    %p109 = scmp.ne.s32.totalorder %s101, %s104
    %p110 = scmp.eq.s32.totalorder %s9, 0
    %p111 = por %p109, %p110
    %p112 = scmp.ne.s32.totalorder %s101, %s104
    %p113 = scmp.eq.s32.totalorder %s14, 1
    %p114 = por %p112, %p113
    %p115 = scmp.ne.s32.totalorder %s104, %s105
    %p116 = scmp.eq.s32.totalorder %s14, 0
    %p117 = por %p115, %p116
    %p118 = scmp.ne.s32.totalorder %s104, %s105
    %p119 = scmp.eq.s32.totalorder %s15, 1
    %p120 = por %p118, %p119
    %p122 = scmp.ne.s32.totalorder %s105, %s121
    %p123 = scmp.eq.s32.totalorder %s15, 0
    %p124 = por %p122, %p123
    %p125 = scmp.le.s32.totalorder 1, %s9
    %p126 = scmp.lt.s32.totalorder %s9, 3
    %p127 = pnand %p125, %p126
    %p128 = pneg %p127
    // Predicated region
    $region9: #{conv2d_same.1} parent=5 // pred_check
      _
    $region10: #{conv2d_same.1} parent=5 // pred_check_branch
      %130 = sbr.rel (%p127) target = $region12
    $region11: #{conv2d_same.1} parent=5 // pred_region
      %s131 = ssub.s32 %s9, 1
      // Predicated region
      $region13: #{conv2d_same.1} parent=11 // pred_check
        %p132 = pneg %p68
      $region14: #{conv2d_same.1} parent=11 // pred_check_branch
        %134 = sbr.rel (%p132) target = $region16
      $region15: #{conv2d_same.1} parent=11 // pred_region
        _
      $region16: #{conv2d_same.1} parent=11 // pred_fallthru
        _
      // Predicated region
      $region17: #{conv2d_same.1} parent=11 // pred_check
        %p135 = pneg %p89
      $region18: #{conv2d_same.1} parent=11 // pred_check_branch
        %137 = sbr.rel (%p135) target = $region20
      $region19: #{conv2d_same.1} parent=11 // pred_region
        _
      $region20: #{conv2d_same.1} parent=11 // pred_fallthru
        _
    $region12: #{conv2d_same.1} parent=5 // pred_fallthru
      _
    %p138 = scmp.lt.s32.totalorder %s9, 2
    // Predicated region
    $region21: #{conv2d_same.1} parent=5 // pred_check
      %p139 = pneg %p138
    $region22: #{conv2d_same.1} parent=5 // pred_check_branch
      %141 = sbr.rel (%p139) target = $region24
    $region23: #{conv2d_same.1} parent=5 // pred_region
      // Predicated region
      $region25: #{conv2d_same.1} parent=23 // pred_check
        %p142 = pneg %p41
      $region26: #{conv2d_same.1} parent=23 // pred_check_branch
        %144 = sbr.rel (%p142) target = $region28
      $region27: #{conv2d_same.1} parent=23 // pred_region
        %p145 = scmp.lt.s32.totalorder %s16, 1
        %s146 = scalar_select %p145, %s16, 1
        %s147 = smul.addr %s146, 4
        %s148 = smul.addr %s147, 4
        %s149 = scalar_lea.vmem %s0, %s148
      $region28: #{conv2d_same.1} parent=23 // pred_fallthru
        _
    $region24: #{conv2d_same.1} parent=5 // pred_fallthru
      _
    %p150 = scmp.le.s32.totalorder 1, %s9
    %p151 = scmp.lt.s32.totalorder %s9, 3
    %p152 = pnand %p150, %p151
    %p153 = pneg %p152
    // Predicated region
    $region29: #{conv2d_same.1} parent=5 // pred_check
      _
    $region30: #{conv2d_same.1} parent=5 // pred_check_branch
      %155 = sbr.rel (%p152) target = $region32
    $region31: #{conv2d_same.1} parent=5 // pred_region
      %s156 = ssub.s32 %s9, 1
      %p157 = scmp.lt.s32.totalorder %s18, 1
      %s158 = scalar_select %p157, %s18, 1
      %s159 = smul.addr %s158, 4
      %s160 = smul.addr %s159, 4
      %s161 = scalar_lea.vmem %s0, %s160
      %p162 = pneg %p47
      %p163 = pneg %p44
      %p164 = pneg %p68
      %p165 = pneg %p65
      %p166 = pneg %p89
      %p167 = pneg %p86
      %p168 = pneg %p117
      %p169 = pneg %p114
      %s170 = smul.u32 3, %s19
      %p171 = scmp.lt.s32.totalorder %s18, 1
      %s172 = scalar_select %p171, %s18, 1
      %p173 = scmp.lt.s32.totalorder %s170, 2
      %s174 = scalar_select %p173, %s170, 2
      %s175 = smul.addr %s172, 3
      %s176 = sadd.s32 %s174, %s175
      %s177 = smul.addr %s176, 8
      %s178 = scalar_lea.vmem %s3, %s177
      %p179 = scmp.lt.s32.totalorder %s18, 1
      %s180 = scalar_select %p179, %s18, 1
      %s181 = smul.addr %s180, 4
      %s182 = smul.addr %s181, 4
      %s183 = scalar_lea.vmem %s0, %s182
      %s184 = smul.u32 3, %s19
      %p185 = scmp.lt.s32.totalorder %s18, 1
      %s186 = scalar_select %p185, %s18, 1
      %p187 = scmp.lt.s32.totalorder %s184, 2
      %s188 = scalar_select %p187, %s184, 2
      %s189 = smul.addr %s186, 3
      %s190 = sadd.s32 %s188, %s189
      %s191 = smul.addr %s190, 8
      %s192 = scalar_lea.vmem %s3, %s191
      %s193 = smul.u32 3, %s19
      %s194 = smul.u32 %s19, 384
      %s195 = sshra.s32 %s194, 7
      %s196 = sand.u32 %s194, 127
      %s197 = smul.addr %s195, 4
      %s198 = scalar_lea.vmem %s183, %s197
      %v199 = vld [vmem:[%s198] sm:$0xff]
      %v200 = vld [vmem:[%s198 + $0x8] sm:$0xff]
      %v203 = vcombine.high %v199, %v199
      %v205 = vcombine.low %v199, %v199
      %v206 = vcombine.low %v200, %v200
      %207 = vrot.lane.b32.xlu0 %v205, 127
      %v208 = vpop.permute.xlu0 %207
      %209 = vrot.lane.b32.xlu0 %v199, 127
      %v210 = vpop.permute.xlu0 %209
      %211 = vrot.lane.b32.xlu0 %v206, 127
      %v212 = vpop.permute.xlu0 %211
      %213 = vrot.lane.b32.xlu0 %v200, 127
      %v214 = vpop.permute.xlu0 %213
      %vm215 = vcmask 1039360
      %v216 = vsel %vm215, %v208, %v210
      %v217 = vsel %vm215, %v210, %v212
      %v218 = vsel %vm215, %v212, %v214
      %v222 = vcombine.high %v200, %v200
      %223 = vrot.lane.b32.xlu0 %v199, 126
      %v224 = vpop.permute.xlu0 %223
      %225 = vrot.lane.b32.xlu0 %v203, 126
      %v226 = vpop.permute.xlu0 %225
      %227 = vrot.lane.b32.xlu0 %v200, 126
      %v228 = vpop.permute.xlu0 %227
      %229 = vrot.lane.b32.xlu0 %v222, 126
      %v230 = vpop.permute.xlu0 %229
      %vm231 = vcmask 1031168
      %v232 = vsel %vm231, %v224, %v226
      %v233 = vsel %vm231, %v226, %v228
      %v234 = vsel %vm231, %v228, %v230
      %238 = vrot.lane.b32.xlu0 %v205, 110
      %v239 = vpop.permute.xlu0 %238
      %240 = vrot.lane.b32.xlu0 %v199, 110
      %v241 = vpop.permute.xlu0 %240
      %242 = vrot.lane.b32.xlu0 %v206, 110
      %v243 = vpop.permute.xlu0 %242
      %244 = vrot.lane.b32.xlu0 %v200, 110
      %v245 = vpop.permute.xlu0 %244
      %vm246 = vcmask 900096
      %v247 = vsel %vm246, %v239, %v241
      %v248 = vsel %vm246, %v241, %v243
      %v249 = vsel %vm246, %v243, %v245
      %253 = vrot.lane.b32.xlu0 %v199, 109
      %v254 = vpop.permute.xlu0 %253
      %255 = vrot.lane.b32.xlu0 %v203, 109
      %v256 = vpop.permute.xlu0 %255
      %257 = vrot.lane.b32.xlu0 %v200, 109
      %v258 = vpop.permute.xlu0 %257
      %259 = vrot.lane.b32.xlu0 %v222, 109
      %v260 = vpop.permute.xlu0 %259
      %vm261 = vcmask 891904
      %v262 = vsel %vm261, %v254, %v256
      %v263 = vsel %vm261, %v256, %v258
      %v264 = vsel %vm261, %v258, %v260
      %268 = vrot.lane.b32.xlu0 %v205, 108
      %v269 = vpop.permute.xlu0 %268
      %270 = vrot.lane.b32.xlu0 %v199, 108
      %v271 = vpop.permute.xlu0 %270
      %272 = vrot.lane.b32.xlu0 %v206, 108
      %v273 = vpop.permute.xlu0 %272
      %274 = vrot.lane.b32.xlu0 %v200, 108
      %v275 = vpop.permute.xlu0 %274
      %vm276 = vcmask 883712
      %v277 = vsel %vm276, %v269, %v271
      %v278 = vsel %vm276, %v271, %v273
      %v279 = vsel %vm276, %v273, %v275
      %283 = vrot.lane.b32.xlu0 %v199, 92
      %v284 = vpop.permute.xlu0 %283
      %285 = vrot.lane.b32.xlu0 %v203, 92
      %v286 = vpop.permute.xlu0 %285
      %287 = vrot.lane.b32.xlu0 %v200, 92
      %v288 = vpop.permute.xlu0 %287
      %289 = vrot.lane.b32.xlu0 %v222, 92
      %v290 = vpop.permute.xlu0 %289
      %vm291 = vcmask 752640
      %v292 = vsel %vm291, %v284, %v286
      %v293 = vsel %vm291, %v286, %v288
      %v294 = vsel %vm291, %v288, %v290
      %298 = vrot.lane.b32.xlu0 %v205, 91
      %v299 = vpop.permute.xlu0 %298
      %300 = vrot.lane.b32.xlu0 %v199, 91
      %v301 = vpop.permute.xlu0 %300
      %302 = vrot.lane.b32.xlu0 %v206, 91
      %v303 = vpop.permute.xlu0 %302
      %304 = vrot.lane.b32.xlu0 %v200, 91
      %v305 = vpop.permute.xlu0 %304
      %vm306 = vcmask 744448
      %v307 = vsel %vm306, %v299, %v301
      %v308 = vsel %vm306, %v301, %v303
      %v309 = vsel %vm306, %v303, %v305
      %313 = vrot.lane.b32.xlu0 %v199, 90
      %v314 = vpop.permute.xlu0 %313
      %315 = vrot.lane.b32.xlu0 %v203, 90
      %v316 = vpop.permute.xlu0 %315
      %317 = vrot.lane.b32.xlu0 %v200, 90
      %v318 = vpop.permute.xlu0 %317
      %319 = vrot.lane.b32.xlu0 %v222, 90
      %v320 = vpop.permute.xlu0 %319
      %vm321 = vcmask 736256
      %v322 = vsel %vm321, %v314, %v316
      %v323 = vsel %vm321, %v316, %v318
      %v324 = vsel %vm321, %v318, %v320
      %vm325 = vcmask 1043456
      %v326 = vsel %vm325, %v199, %v216
      %v327 = vsel %vm325, %v203, %v217
      %v328 = vsel %vm325, %v200, %v218
      %v329 = vsel %vm325, %v232, %v247
      %v330 = vsel %vm325, %v233, %v248
      %v331 = vsel %vm325, %v234, %v249
      %v332 = vsel %vm325, %v262, %v277
      %v333 = vsel %vm325, %v263, %v278
      %v334 = vsel %vm325, %v264, %v279
      %v335 = vsel %vm325, %v292, %v307
      %v336 = vsel %vm325, %v293, %v308
      %v337 = vsel %vm325, %v294, %v309
      %v338 = vld [vmem:[%s1] sm:$0xff]
      %v339 = vld [vmem:[%s2] sm:$0xff]
      %341 = vset.pattern.permute.xlu0 0
      %342 = vperm.xlu0 %341, %v339
      %v343 = vpop.permute.xlu0 %342
      %vm345 = vcmask 293888
      %v347 = vsel %vm345, %v338, 0
      %v349 = vsel %vm325, %v322, 0
      %v351 = vsel %vm325, %v323, 0
      %v353 = vsel %vm325, %v324, 0
      %355 = vmatprep.subr.mxu0 %v327
      %356 = vmatpush1.msra.mxu0 %v326
      %357 = vmatprep.subr.mxu0 %v330
      %358 = vmatpush1.msra.mxu0 %v329
      %359 = vmatprep.subr.mxu0 %v333
      %360 = vmatpush1.msra.mxu0 %v332
      %361 = vmatprep.subr.mxu0 %v336
      %362 = vmatpush1.msra.mxu0 %v335
      %363 = vmatprep.subr.mxu0 %v351
      %364 = vmatpush1.msra.mxu0 %v349
      %365 = vmatprep.subr.mxu0 0.0
      %366 = vmatpush1.msra.mxu0 0.0
      %367 = vmatprep.subr.mxu0 0.0
      %368 = vmatpush1.msra.mxu0 0.0
      %369 = vmatprep.subr.mxu0 0.0
      %370 = vmatpush1.msra.mxu0 0.0
      %371 = vmatprep.subr.mxu0 0.0
      %372 = vmatpush1.msra.mxu0 0.0
      %373 = vmatprep.subr.mxu0 0.0
      %374 = vmatpush1.msra.mxu0 0.0
      %375 = vmatprep.subr.mxu0 0.0
      %376 = vmatpush1.msra.mxu0 0.0
      %377 = vmatprep.subr.mxu0 0.0
      %378 = vmatpush1.msra.mxu0 0.0
      %379 = vmatprep.subr.mxu0 0.0
      %380 = vmatpush1.msra.mxu0 0.0
      %381 = vmatprep.subr.mxu0 0.0
      %382 = vmatpush1.msra.mxu0 0.0
      %383 = vmatprep.subr.mxu0 0.0
      %384 = vmatpush1.msra.mxu0 0.0
      %385 = vmatprep.subr.mxu0 0.0
      %386 = vmatpush1.msra.mxu0 0.0
      %387 = vmatprep.subr.mxu0 0.0
      %388 = vmatpush1.msra.mxu0 0.0
      %389 = vmatprep.subr.mxu0 0.0
      %390 = vmatpush1.msra.mxu0 0.0
      %391 = vmatprep.subr.mxu0 0.0
      %392 = vmatpush1.msra.mxu0 0.0
      %393 = vmatprep.subr.mxu0 0.0
      %394 = vmatpush1.msra.mxu0 0.0
      %395 = vmatprep.subr.mxu0 0.0
      %396 = vmatpush1.msra.mxu0 0.0
      %397 = vmatprep.subr.mxu0 0.0
      %398 = vmatpush1.msra.mxu0 0.0
      %399 = vmatprep.subr.mxu0 0.0
      %400 = vmatpush1.msra.mxu0 0.0
      %401 = vmatprep.subr.mxu0 0.0
      %402 = vmatpush1.msra.mxu0 0.0
      %403 = vmatprep.subr.mxu0 0.0
      %404 = vmatpush1.msra.mxu0 0.0
      %405 = vmatprep.subr.mxu0 0.0
      %406 = vmatpush1.msra.mxu0 0.0
      %407 = vmatprep.subr.mxu0 0.0
      %408 = vmatpush1.msra.mxu0 0.0
      %409 = vmatprep.subr.mxu0 0.0
      %410 = vmatpush1.msra.mxu0 0.0
      %411 = vmatprep.subr.mxu0 0.0
      %412 = vmatpush1.msra.mxu0 0.0
      %413 = vmatprep.subr.mxu0 0.0
      %414 = vmatpush1.msra.mxu0 0.0
      %415 = vmatprep.subr.mxu0 0.0
      %416 = vmatpush1.msra.mxu0 0.0
      %417 = vmatprep.subr.mxu0 0.0
      %418 = vmatpush1.msra.mxu0 0.0
      %419 = vmatprep.mubr.f32.mxu0 0.0
      %420 = vmatmul.mubr.f32.gmra.mrb[0].mxu0 %v347
      %v421 = vpop.f32.mrb[0].mxu0
      %v422 = vadd.f32 %v343, %v421
      %v423 = vpop.f32.mrb[0].mxu0
      %v424 = vadd.f32 %v343, %v423
      %425 = vdwg.mxu0
      %426 = vmatprep.subr.mxu0 0.0
      %427 = vmatpush1.msra.mxu0 %v328
      %428 = vmatprep.subr.mxu0 0.0
      %429 = vmatpush1.msra.mxu0 %v331
      %430 = vmatprep.subr.mxu0 0.0
      %431 = vmatpush1.msra.mxu0 %v334
      %432 = vmatprep.subr.mxu0 0.0
      %433 = vmatpush1.msra.mxu0 %v337
      %434 = vmatprep.subr.mxu0 0.0
      %435 = vmatpush1.msra.mxu0 %v353
      %436 = vmatprep.subr.mxu0 0.0
      %437 = vmatpush1.msra.mxu0 0.0
      %438 = vmatprep.subr.mxu0 0.0
      %439 = vmatpush1.msra.mxu0 0.0
      %440 = vmatprep.subr.mxu0 0.0
      %441 = vmatpush1.msra.mxu0 0.0
      %442 = vmatprep.subr.mxu0 0.0
      %443 = vmatpush1.msra.mxu0 0.0
      %444 = vmatprep.subr.mxu0 0.0
      %445 = vmatpush1.msra.mxu0 0.0
      %446 = vmatprep.subr.mxu0 0.0
      %447 = vmatpush1.msra.mxu0 0.0
      %448 = vmatprep.subr.mxu0 0.0
      %449 = vmatpush1.msra.mxu0 0.0
      %450 = vmatprep.subr.mxu0 0.0
      %451 = vmatpush1.msra.mxu0 0.0
      %452 = vmatprep.subr.mxu0 0.0
      %453 = vmatpush1.msra.mxu0 0.0
      %454 = vmatprep.subr.mxu0 0.0
      %455 = vmatpush1.msra.mxu0 0.0
      %456 = vmatprep.subr.mxu0 0.0
      %457 = vmatpush1.msra.mxu0 0.0
      %458 = vmatprep.subr.mxu0 0.0
      %459 = vmatpush1.msra.mxu0 0.0
      %460 = vmatprep.subr.mxu0 0.0
      %461 = vmatpush1.msra.mxu0 0.0
      %462 = vmatprep.subr.mxu0 0.0
      %463 = vmatpush1.msra.mxu0 0.0
      %464 = vmatprep.subr.mxu0 0.0
      %465 = vmatpush1.msra.mxu0 0.0
      %466 = vmatprep.subr.mxu0 0.0
      %467 = vmatpush1.msra.mxu0 0.0
      %468 = vmatprep.subr.mxu0 0.0
      %469 = vmatpush1.msra.mxu0 0.0
      %470 = vmatprep.subr.mxu0 0.0
      %471 = vmatpush1.msra.mxu0 0.0
      %472 = vmatprep.subr.mxu0 0.0
      %473 = vmatpush1.msra.mxu0 0.0
      %474 = vmatprep.subr.mxu0 0.0
      %475 = vmatpush1.msra.mxu0 0.0
      %476 = vmatprep.subr.mxu0 0.0
      %477 = vmatpush1.msra.mxu0 0.0
      %478 = vmatprep.subr.mxu0 0.0
      %479 = vmatpush1.msra.mxu0 0.0
      %480 = vmatprep.subr.mxu0 0.0
      %481 = vmatpush1.msra.mxu0 0.0
      %482 = vmatprep.subr.mxu0 0.0
      %483 = vmatpush1.msra.mxu0 0.0
      %484 = vmatprep.subr.mxu0 0.0
      %485 = vmatpush1.msra.mxu0 0.0
      %486 = vmatprep.subr.mxu0 0.0
      %487 = vmatpush1.msra.mxu0 0.0
      %488 = vmatprep.subr.mxu0 0.0
      %489 = vmatpush1.msra.mxu0 0.0
      %490 = vmatprep.mubr.f32.mxu0 0.0
      %491 = vmatmul.mubr.f32.gmra.mrb[0].mxu0 %v347
      %v492 = vpop.f32.mrb[0].mxu0
      %v493 = vadd.f32 %v343, %v492
      %v494 = vpop.f32.mrb[0].mxu0
      %495 = vdwg.mxu0
      %496 = vst [vmem:[%s192] sm:$0xff] %v422
      %497 = vst [vmem:[%s192 + $0x8] sm:$0xff] %v424
      %498 = vst [vmem:[%s192 + $0x10] sm:$0xff] %v493
      %s499 = smul.u32 3, %s19
      %p500 = scmp.lt.s32.totalorder %s18, 1
      %s501 = scalar_select %p500, %s18, 1
      %p502 = scmp.lt.s32.totalorder %s499, 2
      %s503 = scalar_select %p502, %s499, 2
      %s504 = smul.addr %s501, 3
      %s505 = sadd.s32 %s503, %s504
      %s506 = smul.addr %s505, 8
      %s507 = scalar_lea.vmem %s3, %s506
      // Predicated region
      $region33: #{conv2d_same.1} parent=31 // pred_check
        %p508 = pneg %p114
      $region34: #{conv2d_same.1} parent=31 // pred_check_branch
        %510 = sbr.rel (%p508) target = $region36
      $region35: #{conv2d_same.1} parent=31 // pred_region
        %s511 = smul.u32 3, %s19
      $region36: #{conv2d_same.1} parent=31 // pred_fallthru
        _
    $region32: #{conv2d_same.1} parent=5 // pred_fallthru
      _
    %p512 = scmp.le.s32.totalorder 2, %s9
    // Predicated region
    $region37: #{conv2d_same.1} parent=5 // pred_check
      %p513 = pneg %p512
    $region38: #{conv2d_same.1} parent=5 // pred_check_branch
      %515 = sbr.rel (%p513) target = $region40
    $region39: #{conv2d_same.1} parent=5 // pred_region
      %s516 = ssub.s32 %s9, 2
      // Predicated region
      $region41: #{conv2d_same.1} parent=39 // pred_check
        %p517 = pneg %p120
      $region42: #{conv2d_same.1} parent=39 // pred_check_branch
        %519 = sbr.rel (%p517) target = $region44
      $region43: #{conv2d_same.1} parent=39 // pred_region
        %s520 = smul.u32 3, %s21
        %p521 = scmp.lt.s32.totalorder %s20, 1
        %s522 = scalar_select %p521, %s20, 1
        %p523 = scmp.lt.s32.totalorder %s520, 2
        %s524 = scalar_select %p523, %s520, 2
        %s525 = smul.addr %s522, 3
        %s526 = sadd.s32 %s524, %s525
        %s527 = smul.addr %s526, 8
        %s528 = scalar_lea.vmem %s3, %s527
      $region44: #{conv2d_same.1} parent=39 // pred_fallthru
        _
    $region40: #{conv2d_same.1} parent=5 // pred_fallthru
      _
  $region6: #{conv2d_same.1} parent=0 // loop_footer
    %s13 = sadd.s32 1, %s9
  $region7: #{conv2d_same.1} parent=0 // loop_footer_branch
    %8 = sbr.rel target = $region3
  $region8: #{conv2d_same.1} parent=0 // loop_exit
    _

</llo_original>
